<compile_context>
chip_gen: v7x
topology: tpu7x:2x2x1
jax: 0.10.0
libtpu: 0.0.40
codegen_flags: <defaults>
</compile_context>

<pallas_src>
import jax
import jax.numpy as jnp
from jax.experimental import pallas as pl
from jax.experimental.pallas import tpu as pltpu

PATCH = 4
C_PAD = 128  # lane-padded feature width (real feature dim D=32 lives in lanes 0..31)


# ----------------------------------------------------------------------------
# Shared glue: NHWC patch unfold (used by both the Pallas wrapper and reference)
# ----------------------------------------------------------------------------
def unfold_patches(x_nchw):
    """NCHW image -> (B, num_patches, p*p*C) with channels last in each patch."""
    B, C, H, W = x_nchw.shape
    p = PATCH
    x = jnp.transpose(x_nchw, (0, 2, 3, 1))                  # NHWC (C on lanes)
    x = x.reshape(B, H // p, p, W // p, p, C)
    x = jnp.transpose(x, (0, 1, 3, 2, 4, 5))                 # (B, Hb, Wb, p, p, C)
    return x.reshape(B, (H // p) * (W // p), p * p * C)


def pad_cols(w, cols):
    return jnp.pad(w, ((0, 0), (0, cols - w.shape[1])))


def pad2d(w, rows, cols):
    return jnp.pad(w, ((0, rows - w.shape[0]), (0, cols - w.shape[1])))


# ----------------------------------------------------------------------------
# ONE fused kernel: patch embed (all 3 streams) + cls token + powerful() +
# box head. The embed intermediate never leaves VMEM.
# ----------------------------------------------------------------------------
def _make_fused_kernel(B, N):
    BN = B * N

    def kernel(xp_ref, we_ref, be_ref, wc_ref, wh_ref, bh_ref, o_ref):
        # --- patch embed for all 3 stacked streams: (3B*N, K) @ (K, 128) + b
        feats = (
            jnp.dot(xp_ref[...], we_ref[...], preferred_element_type=jnp.float32)
            + be_ref[...]
        )                                                     # (3B*N, 128) f32

        # rows [0, BN)       -> template tokens
        # rows [BN, 2BN)     -> online_template tokens (computed by backbone,
        #                       unused downstream -- same as the PyTorch model)
        # rows [2BN, 3BN)    -> search tokens
        t = feats[:BN].reshape(B, N, C_PAD)
        s = feats[2 * BN:].reshape(B, N, C_PAD)

        # --- cls token: mean over template tokens -> linear -> tanh   (B, 128)
        cls = jnp.tanh(
            jnp.dot(jnp.mean(t, axis=1).astype(jnp.bfloat16), wc_ref[...],
                    preferred_element_type=jnp.float32)
        )

        # --- powerful(): power_map = search @ cls^T ; opt = search * power_map
        # TODO(synk): if HW grows to realistic sizes, move this lane reduction
        # onto the MXU (batched matvec) to keep it off the XLU.
        power = jnp.sum(s * cls[:, None, :], axis=-1, keepdims=True)  # (B,N,1)
        opt = s * power                                               # (B,N,128)

        # --- synthetic box head: global mean pool + linear + sigmoid (xyxy)
        pooled = jnp.mean(opt, axis=1)                                # (B, 128)
        o_ref[...] = jax.nn.sigmoid(
            jnp.dot(pooled.astype(jnp.bfloat16), wh_ref[...],
                    preferred_element_type=jnp.float32)
            + bh_ref[...]
        )                                                             # (B, 128)

    return kernel


def fused_backbone_head(xp_bf16, w_e, b_e, w_c, w_h, b_h, B, N):
    R, K = xp_bf16.shape
    out = pl.pallas_call(
        _make_fused_kernel(B, N),
        out_shape=jax.ShapeDtypeStruct((B, C_PAD), jnp.float32),
        grid=(1,),  # single step: tiny problem, splitting only adds overhead
        in_specs=[
            pl.BlockSpec((R, K), lambda i: (0, 0)),          # xp (real K=48)
            pl.BlockSpec((K, C_PAD), lambda i: (0, 0)),      # w_embed
            pl.BlockSpec((1, C_PAD), lambda i: (0, 0)),      # b_embed
            pl.BlockSpec((C_PAD, C_PAD), lambda i: (0, 0)),  # w_cls (bf16)
            pl.BlockSpec((C_PAD, C_PAD), lambda i: (0, 0)),  # w_head (bf16)
            pl.BlockSpec((1, C_PAD), lambda i: (0, 0)),      # b_head
        ],
        out_specs=pl.BlockSpec((B, C_PAD), lambda i: (0, 0)),
        compiler_params=pltpu.CompilerParams(
            dimension_semantics=("arbitrary",)),
    )(xp_bf16, w_e, b_e, w_c, w_h, b_h)
    # lanes 4..127 hold sigmoid(0)=0.5 -- slice out the real xyxy only.
    return out[:, :4]


# ----------------------------------------------------------------------------
# CTTrack_train.forward
# ----------------------------------------------------------------------------
def cttrack_train_forward(params, template, online_template, search,
                          target_in_search, gt_bboxes, memory,
                          t2t=False, t2s=False, s2t=False, s2s=False):
    # target_in_search, gt_bboxes, t2t/t2s/s2t/s2s are accepted but unused,
    # exactly like the PyTorch forward.
    B = template.shape[0]

    # --- synthetic backbone prologue: stack all 3 streams, unfold patches
    imgs = jnp.concatenate([template, online_template, search], axis=0)  # (3B,C,H,W)
    xp = unfold_patches(imgs)                                            # (3B, N, K)
    N, K = xp.shape[1], xp.shape[2]
    xp = xp.reshape(3 * B * N, K).astype(jnp.bfloat16)       # keep real K (no lane pad)

    w_e = pad_cols(params["w_embed"], C_PAD).astype(jnp.bfloat16)   # (K, 128)
    b_e = pad_cols(params["b_embed"], C_PAD)                        # (1, 128) f32
    w_c = pad2d(params["w_cls"], C_PAD, C_PAD).astype(jnp.bfloat16)
    w_h = pad2d(params["w_head"], C_PAD, C_PAD).astype(jnp.bfloat16)
    b_h = pad_cols(params["b_head"], C_PAD)                         # (1, 128) f32

    # --- ONE fused Pallas call: embed + cls + powerful() + box head -> xyxy
    xyxy = fused_backbone_head(xp, w_e, b_e, w_c, w_h, b_h, B, N)   # (B, 4)

    # box_xyxy_to_cxcywh on the tiny (B, 4) result (cheaper than an in-kernel
    # padded 4x4 matmul).
    x0, y0, x1, y1 = xyxy[:, 0], xyxy[:, 1], xyxy[:, 2], xyxy[:, 3]
    pred_boxes = jnp.stack(
        [(x0 + x1) * 0.5, (y0 + y1) * 0.5, x1 - x0, y1 - y0], axis=-1
    ).reshape(B, 1, 4)

    m_dict = {"memory": memory}                         # backbone memory passthrough
    out = {"pred_boxes": pred_boxes, "memory": m_dict}
    loss = jnp.zeros((), jnp.float32)                   # torch.tensor(0.0).cuda()
    return loss, out


# ----------------------------------------------------------------------------
# Pure-JAX reference (mirrors the kernel's bf16-operand / f32-accum math)
# ----------------------------------------------------------------------------
def reference_pred_boxes(params, template, search):
    def embed(x):
        xp = unfold_patches(x).astype(jnp.bfloat16)
        return (
            jnp.dot(xp, params["w_embed"].astype(jnp.bfloat16),
                    preferred_element_type=jnp.float32)
            + params["b_embed"]
        )

    t = embed(template)                                       # (B, N, D)
    s = embed(search)                                         # (B, HW, D)
    cls = jnp.tanh(
        jnp.dot(jnp.mean(t, axis=1).astype(jnp.bfloat16),
                params["w_cls"].astype(jnp.bfloat16),
                preferred_element_type=jnp.float32))          # (B, D)
    power = jnp.sum(s * cls[:, None, :], axis=-1, keepdims=True)
    opt = s * power
    pooled = jnp.mean(opt, axis=1)                            # (B, D)
    xyxy = jax.nn.sigmoid(
        jnp.dot(pooled.astype(jnp.bfloat16),
                params["w_head"].astype(jnp.bfloat16),
                preferred_element_type=jnp.float32)
        + params["b_head"])
    x0, y0, x1, y1 = xyxy[:, 0], xyxy[:, 1], xyxy[:, 2], xyxy[:, 3]
    return jnp.stack(
        [(x0 + x1) * 0.5, (y0 + y1) * 0.5, x1 - x0, y1 - y0], axis=-1
    ).reshape(-1, 1, 4)


if __name__ == "__main__":
    B, C_IN, IMG = 2, 3, 16
    D = 32                       # feature dim of the synthetic backbone
    P = C_IN * PATCH * PATCH     # patch vector length (48)

    key = jax.random.PRNGKey(0)
    keys = jax.random.split(key, 10)

    params = {
        "w_embed": jax.random.normal(keys[0], (P, D), jnp.float32) * 0.05,
        "b_embed": jax.random.normal(keys[1], (1, D), jnp.float32) * 0.01,
        "w_cls": jax.random.normal(keys[2], (D, D), jnp.float32) * 0.05,
        "w_head": jax.random.normal(keys[3], (D, 4), jnp.float32) * 0.1,
        "b_head": jax.random.normal(keys[4], (1, 4), jnp.float32) * 0.1,
    }

    template = jax.random.normal(keys[5], (B, C_IN, IMG, IMG), jnp.float32)
    online_template = jax.random.normal(keys[6], (B, C_IN, IMG, IMG), jnp.float32)
    search = jax.random.normal(keys[7], (B, C_IN, IMG, IMG), jnp.float32)
    target_in_search = jax.random.normal(keys[8], (B, C_IN, IMG, IMG), jnp.float32)
    gt_bboxes = jax.random.uniform(keys[9], (B, 4), jnp.float32)
    memory = jnp.zeros((B, 8, D), jnp.float32)

    # jit the whole wrapper so the unfold/concat/pad/cast prologue fuses and
    # dispatch overhead collapses to one launch graph.
    forward = jax.jit(cttrack_train_forward)
    loss, out = forward(params, template, online_template, search,
                        target_in_search, gt_bboxes, memory)
    pred = jax.block_until_ready(out["pred_boxes"])
    loss = jax.block_until_ready(loss)

    ref = reference_pred_boxes(params, template, search)
    assert pred.shape == (B, 1, 4), pred.shape
    assert jnp.allclose(pred, ref, atol=1e-3, rtol=1e-3), (pred, ref)
    assert float(loss) == 0.0
    assert out["memory"]["memory"].shape == memory.shape

    # TODO(synk): backbone / box_head / decoder are injected nn.Modules in the
    # PyTorch code; they remain deterministic synthetic stand-ins here.
    print("KERNEL_OK")
</pallas_src>

<mosaic_0001>
module attributes {stable_mosaic.version = 11 : i64} {
  func.func @kernel(%arg0: i32, %arg1: memref<96x48xbf16, #tpu.memory_space<vmem>>, %arg2: memref<48x128xbf16, #tpu.memory_space<vmem>>, %arg3: memref<1x128xf32, #tpu.memory_space<vmem>>, %arg4: memref<128x128xbf16, #tpu.memory_space<vmem>>, %arg5: memref<128x128xbf16, #tpu.memory_space<vmem>>, %arg6: memref<1x128xf32, #tpu.memory_space<vmem>>, %arg7: memref<2x128xf32, #tpu.memory_space<vmem>>) attributes {dimension_semantics = [#tpu.dimension_semantics<arbitrary>], iteration_bounds = array<i64: 1>, scalar_prefetch = 0 : i64, scratch_operands = 0 : i64, tpu.core_type = #tpu.core_type<tc>, window_params = [{pipeline_mode = #tpu.pipeline_mode<synchronous>, transform_indices = @transform_0, window_bounds = array<i64: 96, 48>}, {pipeline_mode = #tpu.pipeline_mode<synchronous>, transform_indices = @transform_1, window_bounds = array<i64: 48, 128>}, {pipeline_mode = #tpu.pipeline_mode<synchronous>, transform_indices = @transform_2, window_bounds = array<i64: 1, 128>}, {pipeline_mode = #tpu.pipeline_mode<synchronous>, transform_indices = @transform_3, window_bounds = array<i64: 128, 128>}, {pipeline_mode = #tpu.pipeline_mode<synchronous>, transform_indices = @transform_4, window_bounds = array<i64: 128, 128>}, {pipeline_mode = #tpu.pipeline_mode<synchronous>, transform_indices = @transform_5, window_bounds = array<i64: 1, 128>}, {pipeline_mode = #tpu.pipeline_mode<synchronous>, transform_indices = @transform_6, window_bounds = array<i64: 2, 128>}]} {
    %c0 = arith.constant 0 : index
    %c0_0 = arith.constant 0 : index
    %0 = vector.load %arg1[%c0, %c0_0] : memref<96x48xbf16, #tpu.memory_space<vmem>>, vector<96x48xbf16>
    %c0_1 = arith.constant 0 : index
    %c0_2 = arith.constant 0 : index
    %1 = vector.load %arg2[%c0_1, %c0_2] : memref<48x128xbf16, #tpu.memory_space<vmem>>, vector<48x128xbf16>
    %cst = arith.constant dense<0.000000e+00> : vector<96x128xf32>
    %2 = tpu.matmul %0, %1, %cst {dimension_numbers = #tpu.dot_dimension_numbers<[1], [0], [0], [1], [0, 0, 1, 1], [], []>} : vector<96x48xbf16>, vector<48x128xbf16>, vector<96x128xf32> -> vector<96x128xf32>
    %c0_3 = arith.constant 0 : index
    %c0_4 = arith.constant 0 : index
    %3 = vector.load %arg3[%c0_3, %c0_4] : memref<1x128xf32, #tpu.memory_space<vmem>>, vector<1x128xf32>
    %4 = vector.broadcast %3 : vector<1x128xf32> to vector<96x128xf32>
    %5 = arith.addf %2, %4 : vector<96x128xf32>
    %6 = vector.extract_strided_slice %5 {offsets = [0, 0], sizes = [32, 128], strides = [1, 1]} : vector<96x128xf32> to vector<32x128xf32>
    %7 = vector.shape_cast %6 : vector<32x128xf32> to vector<2x16x128xf32>
    %8 = vector.extract_strided_slice %5 {offsets = [64, 0], sizes = [32, 128], strides = [1, 1]} : vector<96x128xf32> to vector<32x128xf32>
    %9 = vector.shape_cast %8 : vector<32x128xf32> to vector<2x16x128xf32>
    %cst_5 = arith.constant dense<0.000000e+00> : vector<2x128xf32>
    %10 = vector.multi_reduction <add>, %7, %cst_5 [1] : vector<2x16x128xf32> to vector<2x128xf32>
    %cst_6 = arith.constant 1.600000e+01 : f32
    %11 = vector.broadcast %cst_6 : f32 to vector<2x128xf32>
    %12 = arith.divf %10, %11 : vector<2x128xf32>
    %13 = arith.truncf %12 : vector<2x128xf32> to vector<2x128xbf16>
    %c0_7 = arith.constant 0 : index
    %c0_8 = arith.constant 0 : index
    %14 = vector.load %arg4[%c0_7, %c0_8] : memref<128x128xbf16, #tpu.memory_space<vmem>>, vector<128x128xbf16>
    %cst_9 = arith.constant dense<0.000000e+00> : vector<2x128xf32>
    %15 = tpu.matmul %13, %14, %cst_9 {dimension_numbers = #tpu.dot_dimension_numbers<[1], [0], [0], [1], [0, 0, 1, 1], [], []>} : vector<2x128xbf16>, vector<128x128xbf16>, vector<2x128xf32> -> vector<2x128xf32>
    %16 = math.tanh %15 : vector<2x128xf32>
    %17 = vector.shape_cast %16 : vector<2x128xf32> to vector<2x1x128xf32>
    %18 = vector.broadcast %17 : vector<2x1x128xf32> to vector<2x16x128xf32>
    %19 = arith.mulf %9, %18 : vector<2x16x128xf32>
    %cst_10 = arith.constant dense<0.000000e+00> : vector<2x16xf32>
    %20 = vector.multi_reduction <add>, %19, %cst_10 [2] : vector<2x16x128xf32> to vector<2x16xf32>
    %21 = vector.shape_cast %20 : vector<2x16xf32> to vector<2x16x1xf32>
    %22 = vector.broadcast %21 : vector<2x16x1xf32> to vector<2x16x128xf32>
    %23 = arith.mulf %9, %22 : vector<2x16x128xf32>
    %cst_11 = arith.constant dense<0.000000e+00> : vector<2x128xf32>
    %24 = vector.multi_reduction <add>, %23, %cst_11 [1] : vector<2x16x128xf32> to vector<2x128xf32>
    %cst_12 = arith.constant 1.600000e+01 : f32
    %25 = vector.broadcast %cst_12 : f32 to vector<2x128xf32>
    %26 = arith.divf %24, %25 : vector<2x128xf32>
    %27 = arith.truncf %26 : vector<2x128xf32> to vector<2x128xbf16>
    %c0_13 = arith.constant 0 : index
    %c0_14 = arith.constant 0 : index
    %28 = vector.load %arg5[%c0_13, %c0_14] : memref<128x128xbf16, #tpu.memory_space<vmem>>, vector<128x128xbf16>
    %cst_15 = arith.constant dense<0.000000e+00> : vector<2x128xf32>
    %29 = tpu.matmul %27, %28, %cst_15 {dimension_numbers = #tpu.dot_dimension_numbers<[1], [0], [0], [1], [0, 0, 1, 1], [], []>} : vector<2x128xbf16>, vector<128x128xbf16>, vector<2x128xf32> -> vector<2x128xf32>
    %c0_16 = arith.constant 0 : index
    %c0_17 = arith.constant 0 : index
    %30 = vector.load %arg6[%c0_16, %c0_17] : memref<1x128xf32, #tpu.memory_space<vmem>>, vector<1x128xf32>
    %31 = vector.broadcast %30 : vector<1x128xf32> to vector<2x128xf32>
    %32 = arith.addf %29, %31 : vector<2x128xf32>
    %33 = arith.negf %32 : vector<2x128xf32>
    %34 = math.exp %33 : vector<2x128xf32>
    %cst_18 = arith.constant 1.000000e+00 : f32
    %35 = vector.broadcast %cst_18 : f32 to vector<2x128xf32>
    %36 = arith.addf %35, %34 : vector<2x128xf32>
    %37 = arith.divf %35, %36 : vector<2x128xf32>
    %c0_19 = arith.constant 0 : index
    %c0_20 = arith.constant 0 : index
    %38 = vector.load %arg7[%c0_19, %c0_20] : memref<2x128xf32, #tpu.memory_space<vmem>>, vector<2x128xf32>
    tpu.vector_store %arg7[%c0_19, %c0_20], %37 {strides = array<i32>} : memref<2x128xf32, #tpu.memory_space<vmem>>, vector<2x128xf32>,
    return
  }
  func.func @transform_0(%arg0: i32) -> (i32, i32) {
    %c0_i32 = arith.constant 0 : i32
    %c0_i32_0 = arith.constant 0 : i32
    %c0_i32_1 = arith.constant 0 : i32
    return %c0_i32, %c0_i32_0 : i32, i32
  }
  func.func @transform_1(%arg0: i32) -> (i32, i32) {
    %c0_i32 = arith.constant 0 : i32
    %c0_i32_0 = arith.constant 0 : i32
    %c0_i32_1 = arith.constant 0 : i32
    return %c0_i32, %c0_i32_0 : i32, i32
  }
  func.func @transform_2(%arg0: i32) -> (i32, i32) {
    %c0_i32 = arith.constant 0 : i32
    %c0_i32_0 = arith.constant 0 : i32
    %c0_i32_1 = arith.constant 0 : i32
    return %c0_i32, %c0_i32_0 : i32, i32
  }
  func.func @transform_3(%arg0: i32) -> (i32, i32) {
    %c0_i32 = arith.constant 0 : i32
    %c0_i32_0 = arith.constant 0 : i32
    %c0_i32_1 = arith.constant 0 : i32
    return %c0_i32, %c0_i32_0 : i32, i32
  }
  func.func @transform_4(%arg0: i32) -> (i32, i32) {
    %c0_i32 = arith.constant 0 : i32
    %c0_i32_0 = arith.constant 0 : i32
    %c0_i32_1 = arith.constant 0 : i32
    return %c0_i32, %c0_i32_0 : i32, i32
  }
  func.func @transform_5(%arg0: i32) -> (i32, i32) {
    %c0_i32 = arith.constant 0 : i32
    %c0_i32_0 = arith.constant 0 : i32
    %c0_i32_1 = arith.constant 0 : i32
    return %c0_i32, %c0_i32_0 : i32, i32
  }
  func.func @transform_6(%arg0: i32) -> (i32, i32) {
    %c0_i32 = arith.constant 0 : i32
    %c0_i32_0 = arith.constant 0 : i32
    %c0_i32_1 = arith.constant 0 : i32
    return %c0_i32, %c0_i32_0 : i32, i32
  }
}

</mosaic_0001>

<llo_original>
// kernel: cttrack_train_forward.1
$region0: #{cttrack_train_forward.1}
  #allocation0 [shape = 'u32[]', space=smem, size = 0x4, offset = 0x4, fixed_abs, tag = 'smem constant byte address 0x4 - core index']
  #allocation1 [shape = 'u32[144,128]{1,0:T(1,128)}', space=vmem, size = 0x12000, scoped, tag = 'internal scratch']
  %s0 = inlined_call_operand.vmem [shape: bf16[96,48], index: 0, kind: input, shape index: {}]
  %s1 = inlined_call_operand.vmem [shape: bf16[48,128], index: 1, kind: input, shape index: {}]
  %s2 = inlined_call_operand.vmem [shape: f32[1,128], index: 2, kind: input, shape index: {}]
  %s3 = inlined_call_operand.vmem [shape: bf16[128,128], index: 3, kind: input, shape index: {}]
  %s4 = inlined_call_operand.vmem [shape: bf16[128,128], index: 4, kind: input, shape index: {}]
  %s5 = inlined_call_operand.vmem [shape: f32[1,128], index: 5, kind: input, shape index: {}]
  %s6 = inlined_call_operand.vmem [shape: f32[2,128], index: 6, kind: output, shape index: {}]
  %s7 = sld [smem:[#allocation0]]
  $region34: #{cttrack_train_forward.1} parent=0
    _
  %s9 = ssub.s32 1, %s7
  %s10 = scalar_select 0, %s9, %s7
  // Predicated region
  $region2: #{cttrack_train_forward.1} parent=0 // pred_check
    _
  $region3: #{cttrack_train_forward.1} parent=0 // pred_check_branch
    %12 = sbr.rel (0) target = $region5
  $region4: #{cttrack_train_forward.1} parent=0 // pred_region
    _
  $region5: #{cttrack_train_forward.1} parent=0 // pred_fallthru
    _
  // Predicated region
  $region6: #{cttrack_train_forward.1} parent=0 // pred_check
    _
  $region7: #{cttrack_train_forward.1} parent=0 // pred_check_branch
    %14 = sbr.rel (0) target = $region9
  $region8: #{cttrack_train_forward.1} parent=0 // pred_region
    _
  $region9: #{cttrack_train_forward.1} parent=0 // pred_fallthru
    _
  // Predicated region
  $region10: #{cttrack_train_forward.1} parent=0 // pred_check
    _
  $region11: #{cttrack_train_forward.1} parent=0 // pred_check_branch
    %16 = sbr.rel (0) target = $region13
  $region12: #{cttrack_train_forward.1} parent=0 // pred_region
    _
  $region13: #{cttrack_train_forward.1} parent=0 // pred_fallthru
    _
  // Predicated region
  $region14: #{cttrack_train_forward.1} parent=0 // pred_check
    _
  $region15: #{cttrack_train_forward.1} parent=0 // pred_check_branch
    %18 = sbr.rel (0) target = $region17
  $region16: #{cttrack_train_forward.1} parent=0 // pred_region
    _
  $region17: #{cttrack_train_forward.1} parent=0 // pred_fallthru
    _
  // Predicated region
  $region18: #{cttrack_train_forward.1} parent=0 // pred_check
    _
  $region19: #{cttrack_train_forward.1} parent=0 // pred_check_branch
    %20 = sbr.rel (0) target = $region21
  $region20: #{cttrack_train_forward.1} parent=0 // pred_region
    _
  $region21: #{cttrack_train_forward.1} parent=0 // pred_fallthru
    _
  // Predicated region
  $region22: #{cttrack_train_forward.1} parent=0 // pred_check
    _
  $region23: #{cttrack_train_forward.1} parent=0 // pred_check_branch
    %22 = sbr.rel (0) target = $region25
  $region24: #{cttrack_train_forward.1} parent=0 // pred_region
    _
  $region25: #{cttrack_train_forward.1} parent=0 // pred_fallthru
    _
  %v24 = vld [vmem:[%s0] sm:$0xf]
  %v25 = vld [vmem:[%s0 + $0x4] sm:$0xf]
  %v26 = vld [vmem:[%s0 + $0x8] sm:$0xf]
  %v27 = vld [vmem:[%s0 + $0xc] sm:$0xf]
  %v28 = vld [vmem:[%s0 + $0x10] sm:$0xf]
  %v29 = vld [vmem:[%s0 + $0x14] sm:$0xf]
  %v30 = vld [vmem:[%s0 + $0x18] sm:$0xf]
  %v31 = vld [vmem:[%s0 + $0x1c] sm:$0xf]
  %v32 = vld [vmem:[%s0 + $0x20] sm:$0xf]
  %v33 = vld [vmem:[%s0 + $0x24] sm:$0xf]
  %v34 = vld [vmem:[%s0 + $0x28] sm:$0xf]
  %v35 = vld [vmem:[%s0 + $0x2c] sm:$0xf]
  %v36 = vld [vmem:[%s1] sm:$0xf]
  %v37 = vld [vmem:[%s1 + $0x4] sm:$0xf]
  %v38 = vld [vmem:[%s1 + $0x8] sm:$0xf]
  %v39 = vld [vmem:[%s1 + $0xc] sm:$0xf]
  %v40 = vld [vmem:[%s1 + $0x10] sm:$0xf]
  %v41 = vld [vmem:[%s1 + $0x14] sm:$0xf]
  %v42 = vld [vmem:[%s2] sm:$0x1]
  %v44 = vlaneseq
  %v45 = vshrl.u32 %v44, 7
  %v46 = vsub.s32 0, %v45
  %v47 = vrot.slane %v42, %v46
  %v61 = vunpack.c.l.b16 %v24
  %v62 = vunpack.c.l.b16 %v25
  %v63 = vunpack.c.l.b16 %v26
  %v64 = vunpack.c.l.b16 %v27
  %v65 = vunpack.c.l.b16 %v28
  %v66 = vunpack.c.l.b16 %v29
  %v67 = vunpack.c.l.b16 %v30
  %v68 = vunpack.c.l.b16 %v31
  %v69 = vunpack.c.l.b16 %v32
  %v70 = vunpack.c.l.b16 %v33
  %v71 = vunpack.c.l.b16 %v34
  %v72 = vunpack.c.l.b16 %v35
  %v73 = vpack.c.b16 %v62, %v61
  %v74 = vpack.c.b16 %v64, %v63
  %v75 = vpack.c.b16 %v66, %v65
  %v76 = vpack.c.b16 %v68, %v67
  %v77 = vpack.c.b16 %v70, %v69
  %v78 = vpack.c.b16 %v72, %v71
  %v85 = vunpack.c.l.b16 %v36
  %v86 = vunpack.c.l.b16 %v37
  %v87 = vunpack.c.l.b16 %v38
  %v88 = vunpack.c.l.b16 %v39
  %v89 = vunpack.c.l.b16 %v40
  %v90 = vunpack.c.l.b16 %v41
  %v91 = vpack.c.b16 %v86, %v85
  %v92 = vpack.c.b16 %v88, %v87
  %v93 = vpack.c.b16 %v90, %v89
  %vm97 = vcmask 392192
  %v99 = vsel %vm97, %v73, 0
  %v102 = vsel %vm97, %v74, 0
  %v105 = vsel %vm97, %v75, 0
  %v108 = vsel %vm97, %v76, 0
  %v111 = vsel %vm97, %v77, 0
  %v114 = vsel %vm97, %v78, 0
  %116 = vmatprep.subr.bf16.mxu0 0
  %117 = vmatpush1.bf16.msra.mxu0 %v91
  %118 = vmatprep.subr.bf16.mxu0 0
  %119 = vmatpush1.bf16.msra.mxu0 %v92
  %120 = vmatprep.subr.bf16.mxu0 0
  %121 = vmatpush1.bf16.msra.mxu0 %v93
  %122 = vmatprep.subr.bf16.mxu0 0
  %123 = vmatpush1.bf16.msra.mxu0 0
  %124 = vmatprep.subr.bf16.mxu0 0
  %125 = vmatpush1.bf16.msra.mxu0 0
  %126 = vmatprep.subr.bf16.mxu0 0
  %127 = vmatpush1.bf16.msra.mxu0 0
  %128 = vmatprep.subr.bf16.mxu0 0
  %129 = vmatpush1.bf16.msra.mxu0 0
  %130 = vmatprep.subr.bf16.mxu0 0
  %131 = vmatpush1.bf16.msra.mxu0 0
  %132 = vmatprep.subr.bf16.mxu0 0
  %133 = vmatpush1.bf16.msra.mxu0 0
  %134 = vmatprep.subr.bf16.mxu0 0
  %135 = vmatpush1.bf16.msra.mxu0 0
  %136 = vmatprep.subr.bf16.mxu0 0
  %137 = vmatpush1.bf16.msra.mxu0 0
  %138 = vmatprep.subr.bf16.mxu0 0
  %139 = vmatpush1.bf16.msra.mxu0 0
  %140 = vmatprep.subr.bf16.mxu0 0
  %141 = vmatpush1.bf16.msra.mxu0 0
  %142 = vmatprep.subr.bf16.mxu0 0
  %143 = vmatpush1.bf16.msra.mxu0 0
  %144 = vmatprep.subr.bf16.mxu0 0
  %145 = vmatpush1.bf16.msra.mxu0 0
  %146 = vmatprep.subr.bf16.mxu0 0
  %147 = vmatpush1.bf16.msra.mxu0 0
  %148 = vmatprep.mubr.bf16.mxu0 0
  %149 = vmatmul.mubr.bf16.gmra.mrb[0].mxu0 %v99
  %v150 = vpop.f32.mrb[0].mxu0
  %v151 = vadd.f32 %v47, %v150
  %v152 = vpop.f32.mrb[0].mxu0
  %v153 = vpop.f32.mrb[0].mxu0
  %v154 = vadd.f32 %v47, %v153
  %v155 = vpop.f32.mrb[0].mxu0
  %156 = vmatprep.mubr.bf16.mxu0 0
  %157 = vmatmul.mubr.bf16.gmra.mrb[0].mxu0 %v102
  %v158 = vpop.f32.mrb[0].mxu0
  %v159 = vadd.f32 %v47, %v158
  %v160 = vpop.f32.mrb[0].mxu0
  %v161 = vpop.f32.mrb[0].mxu0
  %v162 = vadd.f32 %v47, %v161
  %v163 = vpop.f32.mrb[0].mxu0
  %164 = vmatprep.mubr.bf16.mxu0 0
  %165 = vmatmul.mubr.bf16.gmra.mrb[0].mxu0 %v105
  %v166 = vpop.f32.mrb[0].mxu0
  %v167 = vpop.f32.mrb[0].mxu0
  %v168 = vpop.f32.mrb[0].mxu0
  %v169 = vpop.f32.mrb[0].mxu0
  %170 = vmatprep.mubr.bf16.mxu0 0
  %171 = vmatmul.mubr.bf16.gmra.mrb[0].mxu0 %v108
  %v172 = vpop.f32.mrb[0].mxu0
  %v173 = vpop.f32.mrb[0].mxu0
  %v174 = vpop.f32.mrb[0].mxu0
  %v175 = vpop.f32.mrb[0].mxu0
  %176 = vmatprep.mubr.bf16.mxu0 0
  %177 = vmatmul.mubr.bf16.gmra.mrb[0].mxu0 %v111
  %v178 = vpop.f32.mrb[0].mxu0
  %v179 = vadd.f32 %v47, %v178
  %v180 = vpop.f32.mrb[0].mxu0
  %v181 = vpop.f32.mrb[0].mxu0
  %v182 = vadd.f32 %v47, %v181
  %v183 = vpop.f32.mrb[0].mxu0
  %184 = vmatprep.mubr.bf16.mxu0 0
  %185 = vmatmul.mubr.bf16.gmra.mrb[0].mxu0 %v114
  %v186 = vpop.f32.mrb[0].mxu0
  %v187 = vadd.f32 %v47, %v186
  %v188 = vpop.f32.mrb[0].mxu0
  %v189 = vpop.f32.mrb[0].mxu0
  %v190 = vadd.f32 %v47, %v189
  %v191 = vpop.f32.mrb[0].mxu0
  %192 = vdwg.mxu0
  %v193 = vadd.f32 %v151, %v154
  %v194 = vrot.slane %v193, 4
  %v195 = vadd.f32 %v193, %v194
  %v196 = vrot.slane %v195, 2
  %v197 = vadd.f32 %v195, %v196
  %v198 = vrot.slane %v197, 1
  %v199 = vadd.f32 %v197, %v198
  %v200 = vadd.f32 %v159, %v162
  %v201 = vrot.slane %v200, 4
  %v202 = vadd.f32 %v200, %v201
  %v203 = vrot.slane %v202, 2
  %v204 = vadd.f32 %v202, %v203
  %v205 = vrot.slane %v204, 1
  %v206 = vadd.f32 %v204, %v205
  %v207 = vrcp.pop 16.0
  %v208 = vmul.f32 %v199, %v207
  %v209 = vmul.f32 %v206, %v207
  %v210 = vpack.c.bf16 %v208, %v208
  %v211 = vpack.c.bf16 %v209, %v209
  %v212 = vld [vmem:[%s3] sm:$0xf]
  %v213 = vld [vmem:[%s3 + $0x4] sm:$0xf]
  %v214 = vld [vmem:[%s3 + $0x8] sm:$0xf]
  %v215 = vld [vmem:[%s3 + $0xc] sm:$0xf]
  %v216 = vld [vmem:[%s3 + $0x10] sm:$0xf]
  %v217 = vld [vmem:[%s3 + $0x14] sm:$0xf]
  %v218 = vld [vmem:[%s3 + $0x18] sm:$0xf]
  %v219 = vld [vmem:[%s3 + $0x1c] sm:$0xf]
  %v220 = vld [vmem:[%s3 + $0x20] sm:$0xf]
  %v221 = vld [vmem:[%s3 + $0x24] sm:$0xf]
  %v222 = vld [vmem:[%s3 + $0x28] sm:$0xf]
  %v223 = vld [vmem:[%s3 + $0x2c] sm:$0xf]
  %v224 = vld [vmem:[%s3 + $0x30] sm:$0xf]
  %v225 = vld [vmem:[%s3 + $0x34] sm:$0xf]
  %v226 = vld [vmem:[%s3 + $0x38] sm:$0xf]
  %v227 = vld [vmem:[%s3 + $0x3c] sm:$0xf]
  %v230 = vunpack.c.l.b16 %v210
  %v231 = vunpack.c.l.b16 %v211
  %vm232 = vcmask 1041409
  %v233 = vsel %vm232, %v231, %v230
  %v234 = vpack.c.b16 %v233, %v233
  %v252 = vunpack.c.l.b16 %v212
  %v253 = vunpack.c.l.b16 %v213
  %v254 = vunpack.c.l.b16 %v214
  %v255 = vunpack.c.l.b16 %v215
  %v256 = vunpack.c.l.b16 %v216
  %v257 = vunpack.c.l.b16 %v217
  %v258 = vunpack.c.l.b16 %v218
  %v259 = vunpack.c.l.b16 %v219
  %v260 = vunpack.c.l.b16 %v220
  %v261 = vunpack.c.l.b16 %v221
  %v262 = vunpack.c.l.b16 %v222
  %v263 = vunpack.c.l.b16 %v223
  %v264 = vunpack.c.l.b16 %v224
  %v265 = vunpack.c.l.b16 %v225
  %v266 = vunpack.c.l.b16 %v226
  %v267 = vunpack.c.l.b16 %v227
  %v268 = vpack.c.b16 %v253, %v252
  %v269 = vpack.c.b16 %v255, %v254
  %v270 = vpack.c.b16 %v257, %v256
  %v271 = vpack.c.b16 %v259, %v258
  %v272 = vpack.c.b16 %v261, %v260
  %v273 = vpack.c.b16 %v263, %v262
  %v274 = vpack.c.b16 %v265, %v264
  %v275 = vpack.c.b16 %v267, %v266
  %284 = vmatprep.subr.bf16.mxu0 0
  %285 = vmatpush1.bf16.msra.mxu0 %v268
  %286 = vmatprep.subr.bf16.mxu0 0
  %287 = vmatpush1.bf16.msra.mxu0 %v269
  %288 = vmatprep.subr.bf16.mxu0 0
  %289 = vmatpush1.bf16.msra.mxu0 %v270
  %290 = vmatprep.subr.bf16.mxu0 0
  %291 = vmatpush1.bf16.msra.mxu0 %v271
  %292 = vmatprep.subr.bf16.mxu0 0
  %293 = vmatpush1.bf16.msra.mxu0 %v272
  %294 = vmatprep.subr.bf16.mxu0 0
  %295 = vmatpush1.bf16.msra.mxu0 %v273
  %296 = vmatprep.subr.bf16.mxu0 0
  %297 = vmatpush1.bf16.msra.mxu0 %v274
  %298 = vmatprep.subr.bf16.mxu0 0
  %299 = vmatpush1.bf16.msra.mxu0 %v275
  %300 = vmatprep.subr.bf16.mxu0 0
  %301 = vmatpush1.bf16.msra.mxu0 0
  %302 = vmatprep.subr.bf16.mxu0 0
  %303 = vmatpush1.bf16.msra.mxu0 0
  %304 = vmatprep.subr.bf16.mxu0 0
  %305 = vmatpush1.bf16.msra.mxu0 0
  %306 = vmatprep.subr.bf16.mxu0 0
  %307 = vmatpush1.bf16.msra.mxu0 0
  %308 = vmatprep.subr.bf16.mxu0 0
  %309 = vmatpush1.bf16.msra.mxu0 0
  %310 = vmatprep.subr.bf16.mxu0 0
  %311 = vmatpush1.bf16.msra.mxu0 0
  %312 = vmatprep.subr.bf16.mxu0 0
  %313 = vmatpush1.bf16.msra.mxu0 0
  %314 = vmatprep.subr.bf16.mxu0 0
  %315 = vmatpush1.bf16.msra.mxu0 0
  %316 = vmatprep.mubr.bf16.mxu0 0
  %317 = vmatmul.mubr.bf16.gmra.mrb[0].mxu0 %v234
  %v318 = vpop.f32.mrb[0].mxu0
  %v319 = vadd.f32 0.0, %v318
  %v320 = vpop.f32.mrb[0].mxu0
  %v321 = vpop.f32.mrb[0].mxu0
  %v322 = vpop.f32.mrb[0].mxu0
  %323 = vdwg.mxu0
  %v324 = vtanh.pop %v319
  %v327 = vunpack.c.l.s4 1966171168
  %v328 = vunpack.c.0.s8 %v327
  %v329 = vlaneseq
  %v330 = vshrl.u32 %v329, 7
  %v331 = vsub.s32 %v328, %v330
  %v332 = vrot.slane %v324, %v331
  %v333 = vcombine.high %v332, %v332
  %v335 = vunpack.c.l.s4 1966171168
  %v336 = vunpack.c.0.s8 %v335
  %v337 = vlaneseq
  %v338 = vshrl.u32 %v337, 7
  %v339 = vsub.s32 %v336, %v338
  %v340 = vrot.slane %v332, %v339
  %v342 = vunpack.c.l.s4 1966171168
  %v343 = vunpack.c.0.s8 %v342
  %v344 = vlaneseq
  %v345 = vshrl.u32 %v344, 7
  %v346 = vsub.s32 %v343, %v345
  %v347 = vrot.slane %v333, %v346
  %v348 = vlaneseq
  %v349 = vshrl.u32 %v348, 7
  %v350 = vsub.s32 0, %v349
  %v351 = vrot.slane %v340, %v350
  %v352 = vlaneseq
  %v353 = vshrl.u32 %v352, 7
  %v354 = vsub.s32 0, %v353
  %v355 = vrot.slane %v347, %v354
  %v358 = vmul.f32 %v179, %v351
  %v359 = vmul.f32 %v182, %v351
  %v360 = vmul.f32 %v187, %v355
  %v361 = vmul.f32 %v190, %v355
  %362 = vadd.xlane.f32.xlu0 %v358
  %v363 = vpop.xlane.xlu0 %362
  %364 = vadd.xlane.f32.xlu0 %v359
  %v365 = vpop.xlane.xlu0 %364
  %366 = vadd.xlane.f32.xlu0 %v360
  %v367 = vpop.xlane.xlu0 %366
  %368 = vadd.xlane.f32.xlu0 %v361
  %v369 = vpop.xlane.xlu0 %368
  %v370 = vmul.f32 %v179, %v363
  %v371 = vmul.f32 %v182, %v365
  %v372 = vmul.f32 %v187, %v367
  %v373 = vmul.f32 %v190, %v369
  %v374 = vadd.f32 %v370, %v371
  %v375 = vrot.slane %v374, 4
  %v376 = vadd.f32 %v374, %v375
  %v377 = vrot.slane %v376, 2
  %v378 = vadd.f32 %v376, %v377
  %v379 = vrot.slane %v378, 1
  %v380 = vadd.f32 %v378, %v379
  %v381 = vadd.f32 %v372, %v373
  %v382 = vrot.slane %v381, 4
  %v383 = vadd.f32 %v381, %v382
  %v384 = vrot.slane %v383, 2
  %v385 = vadd.f32 %v383, %v384
  %v386 = vrot.slane %v385, 1
  %v387 = vadd.f32 %v385, %v386
  %v388 = vmul.f32 %v380, %v207
  %v389 = vmul.f32 %v387, %v207
  %v390 = vpack.c.bf16 %v388, %v388
  %v391 = vpack.c.bf16 %v389, %v389
  %v392 = vld [vmem:[%s4] sm:$0xf]
  %v393 = vld [vmem:[%s4 + $0x4] sm:$0xf]
  %v394 = vld [vmem:[%s4 + $0x8] sm:$0xf]
  %v395 = vld [vmem:[%s4 + $0xc] sm:$0xf]
  %v396 = vld [vmem:[%s4 + $0x10] sm:$0xf]
  %v397 = vld [vmem:[%s4 + $0x14] sm:$0xf]
  %v398 = vld [vmem:[%s4 + $0x18] sm:$0xf]
  %v399 = vld [vmem:[%s4 + $0x1c] sm:$0xf]
  %v400 = vld [vmem:[%s4 + $0x20] sm:$0xf]
  %v401 = vld [vmem:[%s4 + $0x24] sm:$0xf]
  %v402 = vld [vmem:[%s4 + $0x28] sm:$0xf]
  %v403 = vld [vmem:[%s4 + $0x2c] sm:$0xf]
  %v404 = vld [vmem:[%s4 + $0x30] sm:$0xf]
  %v405 = vld [vmem:[%s4 + $0x34] sm:$0xf]
  %v406 = vld [vmem:[%s4 + $0x38] sm:$0xf]
  %v407 = vld [vmem:[%s4 + $0x3c] sm:$0xf]
  %v408 = vld [vmem:[%s5] sm:$0x1]
  %v410 = vlaneseq
  %v411 = vshrl.u32 %v410, 7
  %v412 = vsub.s32 0, %v411
  %v413 = vrot.slane %v408, %v412
  %v417 = vunpack.c.l.b16 %v390
  %v418 = vunpack.c.l.b16 %v391
  %v419 = vsel %vm232, %v418, %v417
  %v420 = vpack.c.b16 %v419, %v419
  %v438 = vunpack.c.l.b16 %v392
  %v439 = vunpack.c.l.b16 %v393
  %v440 = vunpack.c.l.b16 %v394
  %v441 = vunpack.c.l.b16 %v395
  %v442 = vunpack.c.l.b16 %v396
  %v443 = vunpack.c.l.b16 %v397
  %v444 = vunpack.c.l.b16 %v398
  %v445 = vunpack.c.l.b16 %v399
  %v446 = vunpack.c.l.b16 %v400
  %v447 = vunpack.c.l.b16 %v401
  %v448 = vunpack.c.l.b16 %v402
  %v449 = vunpack.c.l.b16 %v403
  %v450 = vunpack.c.l.b16 %v404
  %v451 = vunpack.c.l.b16 %v405
  %v452 = vunpack.c.l.b16 %v406
  %v453 = vunpack.c.l.b16 %v407
  %v454 = vpack.c.b16 %v439, %v438
  %v455 = vpack.c.b16 %v441, %v440
  %v456 = vpack.c.b16 %v443, %v442
  %v457 = vpack.c.b16 %v445, %v444
  %v458 = vpack.c.b16 %v447, %v446
  %v459 = vpack.c.b16 %v449, %v448
  %v460 = vpack.c.b16 %v451, %v450
  %v461 = vpack.c.b16 %v453, %v452
  %470 = vmatprep.subr.bf16.mxu0 0
  %471 = vmatpush1.bf16.msra.mxu0 %v454
  %472 = vmatprep.subr.bf16.mxu0 0
  %473 = vmatpush1.bf16.msra.mxu0 %v455
  %474 = vmatprep.subr.bf16.mxu0 0
  %475 = vmatpush1.bf16.msra.mxu0 %v456
  %476 = vmatprep.subr.bf16.mxu0 0
  %477 = vmatpush1.bf16.msra.mxu0 %v457
  %478 = vmatprep.subr.bf16.mxu0 0
  %479 = vmatpush1.bf16.msra.mxu0 %v458
  %480 = vmatprep.subr.bf16.mxu0 0
  %481 = vmatpush1.bf16.msra.mxu0 %v459
  %482 = vmatprep.subr.bf16.mxu0 0
  %483 = vmatpush1.bf16.msra.mxu0 %v460
  %484 = vmatprep.subr.bf16.mxu0 0
  %485 = vmatpush1.bf16.msra.mxu0 %v461
  %486 = vmatprep.subr.bf16.mxu0 0
  %487 = vmatpush1.bf16.msra.mxu0 0
  %488 = vmatprep.subr.bf16.mxu0 0
  %489 = vmatpush1.bf16.msra.mxu0 0
  %490 = vmatprep.subr.bf16.mxu0 0
  %491 = vmatpush1.bf16.msra.mxu0 0
  %492 = vmatprep.subr.bf16.mxu0 0
  %493 = vmatpush1.bf16.msra.mxu0 0
  %494 = vmatprep.subr.bf16.mxu0 0
  %495 = vmatpush1.bf16.msra.mxu0 0
  %496 = vmatprep.subr.bf16.mxu0 0
  %497 = vmatpush1.bf16.msra.mxu0 0
  %498 = vmatprep.subr.bf16.mxu0 0
  %499 = vmatpush1.bf16.msra.mxu0 0
  %500 = vmatprep.subr.bf16.mxu0 0
  %501 = vmatpush1.bf16.msra.mxu0 0
  %502 = vmatprep.mubr.bf16.mxu0 0
  %503 = vmatmul.mubr.bf16.gmra.mrb[0].mxu0 %v420
  %v504 = vpop.f32.mrb[0].mxu0
  %v505 = vadd.f32 %v413, %v504
  %v506 = vpop.f32.mrb[0].mxu0
  %v507 = vpop.f32.mrb[0].mxu0
  %v508 = vpop.f32.mrb[0].mxu0
  %509 = vdwg.mxu0
  %v510 = vxor.u32 %v505, 2147483648
  %v511 = vmul.f32 %v510, 1.442695
  %v512 = vpow.pop %v511
  %v513 = vadd.f32 %v512, 1.0
  %v514 = vrcp.pop %v513
  %v515 = vmul.f32 1.0, %v514
  %516 = vst [vmem:[%s6] sm:$0x3] %v515
  // Predicated region
  $region26: #{cttrack_train_forward.1} parent=0 // pred_check
    _
  $region27: #{cttrack_train_forward.1} parent=0 // pred_check_branch
    %518 = sbr.rel (0) target = $region29
  $region28: #{cttrack_train_forward.1} parent=0 // pred_region
    _
  $region29: #{cttrack_train_forward.1} parent=0 // pred_fallthru
    _
  // Predicated region
  $region30: #{cttrack_train_forward.1} parent=0 // pred_check
    _
  $region31: #{cttrack_train_forward.1} parent=0 // pred_check_branch
    %520 = sbr.rel (0) target = $region33
  $region32: #{cttrack_train_forward.1} parent=0 // pred_region
    _
  $region33: #{cttrack_train_forward.1} parent=0 // pred_fallthru
    _

</llo_original>
